<compile_context>
chip_gen: v5e
topology: v5e:2x2
jax: 0.10.0
libtpu: 0.0.40
codegen_flags: <defaults>
</compile_context>

<pallas_src>
import functools

import jax
import jax.numpy as jnp
from jax import lax
from jax.experimental import pallas as pl
from jax.experimental.pallas import tpu as pltpu


def _embedder_kernel(dropout_p, train,
                     seed_ref,        # SMEM (1,) int32
                     ids_ref,         # (T, 4) int32: offset [token, pos, type, turn] ids
                     table_ref,       # (V_tot_pad, H) fused table, VMEM-resident
                     out_ref):        # (T, H)
    T, H = out_ref.shape
    V = table_ref.shape[0]

    ids = ids_ref[...]                                          # (T, 4)
    col = lax.broadcasted_iota(jnp.int32, (T, V), 1)            # (T, V)
    # The four id streams hit disjoint column ranges of the fused table, so the OR of the
    # four one-hots is exactly the multi-hot selector (values are only 0/1).
    hot = ((col == ids[:, 0:1]) | (col == ids[:, 1:2])
           | (col == ids[:, 2:3]) | (col == ids[:, 3:4]))
    multihot = hot.astype(table_ref.dtype)

    # bf16 tables: single MXU pass, exact row gather with f32 accumulation.
    # f32 tables: HIGHEST keeps the gather bit-exact (at 6x the MXU passes).
    precision = (lax.Precision.HIGHEST if table_ref.dtype == jnp.float32
                 else lax.Precision.DEFAULT)
    emb = jnp.dot(multihot, table_ref[...],
                  preferred_element_type=jnp.float32, precision=precision)

    if train and dropout_p > 0.0:
        # One PRNG seed per token block (hash in the block id to decorrelate streams).
        # TODO(synk): cannot match torch's RNG stream bit-for-bit; Bernoulli-keep with
        # 1/(1-p) scaling semantics do match nn.Dropout.
        pltpu.prng_seed(seed_ref[0] ^ (pl.program_id(0) * 1000003 + 12345))
        bits = pltpu.bitcast(pltpu.prng_random_bits(emb.shape), jnp.uint32)
        thresh = jnp.uint32(min(int(round(dropout_p * (2.0 ** 32))), 2 ** 32 - 1))
        keep = bits >= thresh                                    # P(keep) = 1 - p
        emb = emb * jnp.where(keep, jnp.float32(1.0 / (1.0 - dropout_p)), jnp.float32(0.0))

    out_ref[...] = emb.astype(out_ref.dtype)


def embedder_forward(token_inp, pos_inp, type_inp, turn_inp,
                     tok_table, pos_table, type_table, turn_table,
                     *, dropout_p=0.0, train=False, seed=0,
                     block_tokens=512,
                     out_dtype=jnp.bfloat16,
                     table_compute_dtype=jnp.bfloat16):
    """Pallas embedder forward. Returns (B, S, H) in `out_dtype`."""
    assert block_tokens % 128 == 0
    assert 0.0 <= float(dropout_p) < 1.0, "dropout_p must be in [0, 1)"
    B, S = token_inp.shape
    H = tok_table.shape[1]
    n = B * S

    # ---- Fuse the four tables into one (row ranges are disjoint), pad rows to 128. ----
    v_tok, v_pos, v_type, v_turn = (t.shape[0] for t in
                                    (tok_table, pos_table, type_table, turn_table))
    offsets = (0, v_tok, v_tok + v_pos, v_tok + v_pos + v_type)
    v_tot = v_tok + v_pos + v_type + v_turn
    v_pad = ((v_tot + 127) // 128) * 128
    table = jnp.concatenate([tok_table, pos_table, type_table, turn_table],
                            axis=0).astype(table_compute_dtype)
    if v_pad != v_tot:
        table = jnp.pad(table, ((0, v_pad - v_tot), (0, 0)))

    # ---- One packed, lane-dense id array: (n, 4) int32, offset into the fused table. ----
    ids = jnp.stack(
        [token_inp.reshape(-1).astype(jnp.int32) + offsets[0],
         pos_inp.reshape(-1).astype(jnp.int32) + offsets[1],
         type_inp.reshape(-1).astype(jnp.int32) + offsets[2],
         turn_inp.reshape(-1).astype(jnp.int32) + offsets[3]],
        axis=1)

    # ---- Token-block size T: big for amortization; >= 2 blocks when possible so the
    #      "parallel" grid axis can be sharded across both v7x TensorCores.  Output is
    #      UNPADDED; the last block may be partial (masked stores), so no out[:n] copy. ----
    if n <= block_tokens:
        T = max(8, (((n + 1) // 2 + 7) // 8) * 8)
    else:
        T = block_tokens
    grid = (pl.cdiv(n, T),)

    seed_arr = jnp.array([seed], dtype=jnp.int32)

    # ---- VMEM budget: resident fused table (x2 for the pipeline's second buffer),
    #      double-buffered id/output blocks, multi-hot + f32 accumulator temporaries. ----
    out_isz = jnp.dtype(out_dtype).itemsize
    tab_isz = jnp.dtype(table_compute_dtype).itemsize
    vmem_needed = (2 * v_pad * H * tab_isz          # resident table (+ spare buffer)
                   + 2 * T * 128 * 4                # packed ids blocks (lane-padded)
                   + 2 * T * H * out_isz            # output blocks
                   + T * v_pad * 4 + T * H * 4)     # multi-hot + f32 accumulator
    vmem_limit = int(min(max(2 * vmem_needed, 32 << 20), 48 << 20))   # fits v7x 64 MiB/TC

    kernel = functools.partial(_embedder_kernel, float(dropout_p), bool(train))
    grid_spec = pltpu.PrefetchScalarGridSpec(
        num_scalar_prefetch=0,
        grid=grid,
        in_specs=[
            pl.BlockSpec(memory_space=pltpu.MemorySpace.SMEM),     # seed
            pl.BlockSpec((T, 4), lambda i: (i, 0)),                # packed ids
            pl.BlockSpec((v_pad, H), lambda i: (0, 0)),            # resident fused table
        ],
        out_specs=pl.BlockSpec((T, H), lambda i: (i, 0)),
    )

    out = pl.pallas_call(
        kernel,
        out_shape=jax.ShapeDtypeStruct((n, H), out_dtype),
        grid_spec=grid_spec,
        compiler_params=pltpu.CompilerParams(
            dimension_semantics=("parallel",),
            vmem_limit_bytes=vmem_limit),
    )(seed_arr, ids, table)

    return out.reshape(B, S, H)


def xavier_uniform(key, shape, dtype=jnp.float32):
    # nn.init.xavier_uniform_ on a 2D (num_embeddings, hidden) weight:
    fan_out, fan_in = shape
    bound = (6.0 / (fan_in + fan_out)) ** 0.5
    return jax.random.uniform(key, shape, dtype, minval=-bound, maxval=bound)


if __name__ == "__main__":
    # Small config consistent with the module's __init__.
    vocab_size = 64
    max_position_embeddings = 32
    type_vocab_size = 4
    turn_vocab_size = 8
    hidden_size = 128
    hidden_dropout_prob = 0.1
    B, S = 2, 8

    key = jax.random.PRNGKey(0)
    k_tok, k_pos, k_type, k_turn, k_i0, k_i1, k_i2, k_i3 = jax.random.split(key, 8)

    tok_table = xavier_uniform(k_tok, (vocab_size, hidden_size))
    pos_table = xavier_uniform(k_pos, (max_position_embeddings, hidden_size))
    type_table = xavier_uniform(k_type, (type_vocab_size, hidden_size))
    turn_table = xavier_uniform(k_turn, (turn_vocab_size, hidden_size))

    token_inp = jax.random.randint(k_i0, (B, S), 0, vocab_size, dtype=jnp.int32)
    pos_inp = jnp.broadcast_to(jnp.arange(S, dtype=jnp.int32), (B, S))
    type_inp = jax.random.randint(k_i2, (B, S), 0, type_vocab_size, dtype=jnp.int32)
    turn_inp = jax.random.randint(k_i3, (B, S), 0, turn_vocab_size, dtype=jnp.int32)

    # Eval-mode forward (dropout is identity in eval, matching nn.Dropout.eval()).
    out = embedder_forward(
        token_inp, pos_inp, type_inp, turn_inp,
        tok_table, pos_table, type_table, turn_table,
        dropout_p=hidden_dropout_prob, train=False, seed=0,
    )
    out = jax.block_until_ready(out)

    # Pure-JAX f32 reference for correctness (kernel computes with bf16 tables/output,
    # so compare at bf16-appropriate tolerance).
    ref = (jnp.take(tok_table, token_inp, axis=0)
           + jnp.take(pos_table, pos_inp, axis=0)
           + jnp.take(type_table, type_inp, axis=0)
           + jnp.take(turn_table, turn_inp, axis=0))

    assert out.shape == (B, S, hidden_size)
    assert jnp.allclose(out.astype(jnp.float32), ref, atol=2e-2, rtol=2e-2), \
        "mismatch vs reference"
    print("KERNEL_OK")
</pallas_src>

<mosaic_0001>
module attributes {stable_mosaic.version = 11 : i64} {
  func.func @_embedder_kernel(%arg0: i32, %arg1: memref<1xi32, #tpu.memory_space<smem>>, %arg2: memref<8x4xi32, #tpu.memory_space<vmem>>, %arg3: memref<128x128xbf16, #tpu.memory_space<vmem>>, %arg4: memref<8x128xbf16, #tpu.memory_space<vmem>>) attributes {dimension_semantics = [#tpu.dimension_semantics<parallel>], iteration_bounds = array<i64: 2>, scalar_prefetch = 0 : i64, scratch_operands = 0 : i64, tpu.core_type = #tpu.core_type<tc>, window_params = [{transform_indices = @transform_0, window_bounds = array<i64: 1>}, {transform_indices = @transform_1, window_bounds = array<i64: 8, 4>}, {pipeline_mode = #tpu.pipeline_mode<synchronous>, transform_indices = @transform_2, window_bounds = array<i64: 128, 128>}, {transform_indices = @transform_3, window_bounds = array<i64: 8, 128>}]} {
    %c0 = arith.constant 0 : index
    %c0_0 = arith.constant 0 : index
    %0 = vector.load %arg2[%c0, %c0_0] : memref<8x4xi32, #tpu.memory_space<vmem>>, vector<8x4xi32>
    %1 = tpu.iota {dimensions = array<i32: 1>} : vector<8x128xi32>
    %2 = vector.extract_strided_slice %0 {offsets = [0, 0], sizes = [8, 1], strides = [1, 1]} : vector<8x4xi32> to vector<8x1xi32>
    %3 = vector.broadcast %2 : vector<8x1xi32> to vector<8x128xi32>
    %4 = arith.cmpi eq, %1, %3 : vector<8x128xi32>
    %5 = vector.extract_strided_slice %0 {offsets = [0, 1], sizes = [8, 1], strides = [1, 1]} : vector<8x4xi32> to vector<8x1xi32>
    %6 = vector.broadcast %5 : vector<8x1xi32> to vector<8x128xi32>
    %7 = arith.cmpi eq, %1, %6 : vector<8x128xi32>
    %8 = arith.ori %4, %7 : vector<8x128xi1>
    %9 = vector.extract_strided_slice %0 {offsets = [0, 2], sizes = [8, 1], strides = [1, 1]} : vector<8x4xi32> to vector<8x1xi32>
    %10 = vector.broadcast %9 : vector<8x1xi32> to vector<8x128xi32>
    %11 = arith.cmpi eq, %1, %10 : vector<8x128xi32>
    %12 = arith.ori %8, %11 : vector<8x128xi1>
    %13 = vector.extract_strided_slice %0 {offsets = [0, 3], sizes = [8, 1], strides = [1, 1]} : vector<8x4xi32> to vector<8x1xi32>
    %14 = vector.broadcast %13 : vector<8x1xi32> to vector<8x128xi32>
    %15 = arith.cmpi eq, %1, %14 : vector<8x128xi32>
    %16 = arith.ori %12, %15 : vector<8x128xi1>
    %17 = arith.extui %16 : vector<8x128xi1> to vector<8x128xi32>
    %18 = arith.sitofp %17 : vector<8x128xi32> to vector<8x128xf32>
    %19 = arith.truncf %18 : vector<8x128xf32> to vector<8x128xbf16>
    %c0_1 = arith.constant 0 : index
    %c0_2 = arith.constant 0 : index
    %20 = vector.load %arg3[%c0_1, %c0_2] : memref<128x128xbf16, #tpu.memory_space<vmem>>, vector<128x128xbf16>
    %cst = arith.constant dense<0.000000e+00> : vector<8x128xf32>
    %21 = tpu.matmul %19, %20, %cst {dimension_numbers = #tpu.dot_dimension_numbers<[1], [0], [0], [1], [0, 0, 1, 1], [], []>} : vector<8x128xbf16>, vector<128x128xbf16>, vector<8x128xf32> -> vector<8x128xf32>
    %22 = arith.truncf %21 : vector<8x128xf32> to vector<8x128xbf16>
    %c0_3 = arith.constant 0 : index
    %c0_4 = arith.constant 0 : index
    %23 = vector.load %arg4[%c0_3, %c0_4] : memref<8x128xbf16, #tpu.memory_space<vmem>>, vector<8x128xbf16>
    tpu.vector_store %arg4[%c0_3, %c0_4], %22 {strides = array<i32>} : memref<8x128xbf16, #tpu.memory_space<vmem>>, vector<8x128xbf16>,
    return
  }
  func.func @transform_0(%arg0: i32) -> i32 {
    %c0_i32 = arith.constant 0 : i32
    %c0_i32_0 = arith.constant 0 : i32
    return %c0_i32 : i32
  }
  func.func @transform_1(%arg0: i32) -> (i32, i32) {
    %c0_i32 = arith.constant 0 : i32
    %c0_i32_0 = arith.constant 0 : i32
    return %arg0, %c0_i32 : i32, i32
  }
  func.func @transform_2(%arg0: i32) -> (i32, i32) {
    %c0_i32 = arith.constant 0 : i32
    %c0_i32_0 = arith.constant 0 : i32
    %c0_i32_1 = arith.constant 0 : i32
    return %c0_i32, %c0_i32_0 : i32, i32
  }
  func.func @transform_3(%arg0: i32) -> (i32, i32) {
    %c0_i32 = arith.constant 0 : i32
    %c0_i32_0 = arith.constant 0 : i32
    return %arg0, %c0_i32 : i32, i32
  }
}

</mosaic_0001>

<llo_original>
// kernel: tpu_custom_call.1
$region0: #{tpu_custom_call.1}
  #allocation0 [shape = 'u32[]', space=smem, size = 0x4, offset = 0x4, fixed_abs, tag = 'smem constant byte address 0x4 - core index']
  #allocation1 [shape = 'u32[72,128]{1,0:T(1,128)}', space=vmem, size = 0x9000, scoped, tag = 'internal scratch']
  #allocation2 [shape = 's32[1]{0:T(128)S(6)}', space=smem, size = 0x200, scoped, tag = 'scoped memory for tpu_custom_call.1']
  %s0 = inlined_call_operand.<no memory space> [shape: s32[1], index: 0, kind: input, shape index: {}]
  %s1 = inlined_call_operand.vmem [shape: s32[16,4], index: 1, kind: input, shape index: {}]
  %s2 = inlined_call_operand.hbm [shape: bf16[128,128], index: 2, kind: input, shape index: {}]
  %s3 = inlined_call_operand.hbm [shape: bf16[16,128], index: 3, kind: output, shape index: {}]
  %s4 = sld [smem:[#allocation0]]
  $region49: #{tpu_custom_call.1} parent=0
    _
  %s6 = ssub.s32 1, %s4
  %s7 = scalar_select 0, %s6, %s4
  %8 = sst [smem:[#allocation2]] %s0
  $region1: #{tpu_custom_call.1} parent=0
    #allocation3 [shape = 'u8[32768]{0}', space=vmem, size = 0x8000, scoped, tag = 'input window, operand 2, single buffered']
    #allocation4 [shape = 's32[2]{0}', space=sflag, size = 0x8, scoped, tag = 'scoped memory for tpu_custom_call.1']
    #allocation5 [shape = 's32[2]{0}', space=sflag, size = 0x8, scoped, tag = 'scoped memory for tpu_custom_call.1']
    #allocation6 [shape = 'u8[4096]{0}', space=vmem, size = 0x1000, scoped, tag = 'output window, operand 0']
    %9 = vsyncpa [#allocation4], 0
    %10 = vsyncpa [#allocation5], 0
    %s11 = scalar_lea.sflag [#allocation5], 1
    %12 = vsyncpa %s11, 0
    loop: start=0, step=1, limit=4
    $region2: #{tpu_custom_call.1} parent=1 // loop_pre_header
      _
    $region3: #{tpu_custom_call.1} parent=1 // loop_header
      %s14 = sphi 0, %s18
      %p15 = scmp.ge.s32.totalorder %s14, 4
      %s22 = sphi 0, %s22
      %s24 = sphi 0, %s22
      %s25 = sphi 0, %s24
      %s39 = sphi 0, %s25
      %s45 = sphi 0, %s47
      %s48 = sphi 0, %s45
      %s49 = sphi 0, %s48
      %s65 = sphi 0, %s49
      %s69 = sphi 0, %s69
      %s71 = sphi 0, %s69
      %s72 = sphi 0, %s71
      %s86 = sphi 0, %s72
      %s92 = sphi 0, %s94
      %s95 = sphi 0, %s92
      %s96 = sphi 0, %s95
      %s112 = sphi 0, %s96
    $region4: #{tpu_custom_call.1} parent=1 // loop_header_branch
      %17 = sbr.rel (%p15) target = $region8
    $region5: #{tpu_custom_call.1} parent=1 // loop_body
      %s19 = ssub.s32 %s14, 1
      %s20 = ssub.s32 %s14, 2
      %s21 = sadd.s32 %s14, 1
      %s23 = sadd.s32 %s22, 1
      %p26 = scmp.eq.s32.totalorder %s14, 1
      %p27 = scmp.ne.s32.totalorder %s22, %s24
      %p28 = scmp.eq.s32.totalorder %s14, 0
      %p29 = por %p27, %p28
      %p30 = scmp.ne.s32.totalorder %s22, %s24
      %p31 = scmp.eq.s32.totalorder %s19, 1
      %p32 = por %p30, %p31
      %p33 = scmp.ne.s32.totalorder %s24, %s25
      %p34 = scmp.eq.s32.totalorder %s19, 0
      %p35 = por %p33, %p34
      %p36 = scmp.ne.s32.totalorder %s24, %s25
      %p37 = scmp.eq.s32.totalorder %s20, 1
      %p38 = por %p36, %p37
      %p40 = scmp.ne.s32.totalorder %s25, %s39
      %p41 = scmp.eq.s32.totalorder %s20, 0
      %p42 = por %p40, %p41
      %s43 = ssub.s32 %s14, %s21
      %p44 = scmp.eq.s32.totalorder %s43, 0
      %s46 = sadd.s32 %s45, 1
      %s47 = scalar_select %p44, %s45, %s46
      %p50 = pneg %p44
      %p51 = scmp.eq.s32.totalorder %s14, 1
      %p52 = por %p50, %p51
      %p53 = scmp.ne.s32.totalorder %s45, %s48
      %p54 = scmp.eq.s32.totalorder %s14, 0
      %p55 = por %p53, %p54
      %p56 = scmp.ne.s32.totalorder %s45, %s48
      %p57 = scmp.eq.s32.totalorder %s19, 1
      %p58 = por %p56, %p57
      %p59 = scmp.ne.s32.totalorder %s48, %s49
      %p60 = scmp.eq.s32.totalorder %s19, 0
      %p61 = por %p59, %p60
      %p62 = scmp.ne.s32.totalorder %s48, %s49
      %p63 = scmp.eq.s32.totalorder %s20, 1
      %p64 = por %p62, %p63
      %p66 = scmp.ne.s32.totalorder %s49, %s65
      %p67 = scmp.eq.s32.totalorder %s20, 0
      %p68 = por %p66, %p67
      %s70 = sadd.s32 %s69, 1
      %p73 = scmp.eq.s32.totalorder %s14, 1
      %p74 = scmp.ne.s32.totalorder %s69, %s71
      %p75 = scmp.eq.s32.totalorder %s14, 0
      %p76 = por %p74, %p75
      %p77 = scmp.ne.s32.totalorder %s69, %s71
      %p78 = scmp.eq.s32.totalorder %s19, 1
      %p79 = por %p77, %p78
      %p80 = scmp.ne.s32.totalorder %s71, %s72
      %p81 = scmp.eq.s32.totalorder %s19, 0
      %p82 = por %p80, %p81
      %p83 = scmp.ne.s32.totalorder %s71, %s72
      %p84 = scmp.eq.s32.totalorder %s20, 1
      %p85 = por %p83, %p84
      %p87 = scmp.ne.s32.totalorder %s72, %s86
      %p88 = scmp.eq.s32.totalorder %s20, 0
      %p89 = por %p87, %p88
      %s90 = ssub.s32 %s14, %s21
      %p91 = scmp.eq.s32.totalorder %s90, 0
      %s93 = sadd.s32 %s92, 1
      %s94 = scalar_select %p91, %s92, %s93
      %p97 = pneg %p91
      %p98 = scmp.eq.s32.totalorder %s14, 1
      %p99 = por %p97, %p98
      %p100 = scmp.ne.s32.totalorder %s92, %s95
      %p101 = scmp.eq.s32.totalorder %s14, 0
      %p102 = por %p100, %p101
      %p103 = scmp.ne.s32.totalorder %s92, %s95
      %p104 = scmp.eq.s32.totalorder %s19, 1
      %p105 = por %p103, %p104
      %p106 = scmp.ne.s32.totalorder %s95, %s96
      %p107 = scmp.eq.s32.totalorder %s19, 0
      %p108 = por %p106, %p107
      %p109 = scmp.ne.s32.totalorder %s95, %s96
      %p110 = scmp.eq.s32.totalorder %s20, 1
      %p111 = por %p109, %p110
      %p113 = scmp.ne.s32.totalorder %s96, %s112
      %p114 = scmp.eq.s32.totalorder %s20, 0
      %p115 = por %p113, %p114
      %p116 = scmp.le.s32.totalorder 1, %s14
      %p117 = scmp.lt.s32.totalorder %s14, 3
      %p118 = pnand %p116, %p117
      %p119 = pneg %p118
      // Predicated region
      $region9: #{tpu_custom_call.1} parent=5 // pred_check
        _
      $region10: #{tpu_custom_call.1} parent=5 // pred_check_branch
        %121 = sbr.rel (%p118) target = $region12
      $region11: #{tpu_custom_call.1} parent=5 // pred_region
        %s122 = ssub.s32 %s14, 1
        // Predicated region
        $region13: #{tpu_custom_call.1} parent=11 // pred_check
          %p123 = pneg %p35
        $region14: #{tpu_custom_call.1} parent=11 // pred_check_branch
          %125 = sbr.rel (%p123) target = $region16
        $region15: #{tpu_custom_call.1} parent=11 // pred_region
          _
        $region16: #{tpu_custom_call.1} parent=11 // pred_fallthru
          _
        // Predicated region
        $region17: #{tpu_custom_call.1} parent=11 // pred_check
          %p126 = pneg %p82
        $region18: #{tpu_custom_call.1} parent=11 // pred_check_branch
          %128 = sbr.rel (%p126) target = $region20
        $region19: #{tpu_custom_call.1} parent=11 // pred_region
          %130 = vsyncadd [#allocation4], 0
          %s131 = sshll.u32 %s2, 4
          %s132 = int_to_ptr.hbm [resolvable:$true] %s131
          %s133 = sshll.u32 [#allocation3], 4
          %s134 = int_to_ptr.vmem [resolvable:$true] %s133
          %139 = dma.hbm_to_vmem [thread:$0]  %s132, 1024, %s134, [#allocation4], 64, 64, 4
        $region20: #{tpu_custom_call.1} parent=11 // pred_fallthru
          _
      $region12: #{tpu_custom_call.1} parent=5 // pred_fallthru
        _
      %p140 = scmp.lt.s32.totalorder %s14, 2
      // Predicated region
      $region21: #{tpu_custom_call.1} parent=5 // pred_check
        %p141 = pneg %p140
      $region22: #{tpu_custom_call.1} parent=5 // pred_check_branch
        %143 = sbr.rel (%p141) target = $region24
      $region23: #{tpu_custom_call.1} parent=5 // pred_region
        // Predicated region
        $region25: #{tpu_custom_call.1} parent=23 // pred_check
          %p144 = pneg %p55
        $region26: #{tpu_custom_call.1} parent=23 // pred_check_branch
          %146 = sbr.rel (%p144) target = $region28
        $region27: #{tpu_custom_call.1} parent=23 // pred_region
          %p147 = scmp.lt.s32.totalorder %s14, 1
          %s148 = scalar_select %p147, %s14, 1
          %s149 = smul.addr %s148, 8
          %s150 = scalar_lea.vmem %s1, %s149
        $region28: #{tpu_custom_call.1} parent=23 // pred_fallthru
          _
      $region24: #{tpu_custom_call.1} parent=5 // pred_fallthru
        _
      %p151 = scmp.le.s32.totalorder 1, %s14
      %p152 = scmp.lt.s32.totalorder %s14, 3
      %p153 = pnand %p151, %p152
      %p154 = pneg %p153
      // Predicated region
      $region29: #{tpu_custom_call.1} parent=5 // pred_check
        _
      $region30: #{tpu_custom_call.1} parent=5 // pred_check_branch
        %156 = sbr.rel (%p153) target = $region32
      $region31: #{tpu_custom_call.1} parent=5 // pred_region
        %s157 = ssub.s32 %s14, 1
        // Predicated region
        $region33: #{tpu_custom_call.1} parent=31 // pred_check
          %p158 = pneg %p82
        $region34: #{tpu_custom_call.1} parent=31 // pred_check_branch
          %160 = sbr.rel (%p158) target = $region36
        $region35: #{tpu_custom_call.1} parent=31 // pred_region
          %162 = dma.done [#allocation4], 1024
        $region36: #{tpu_custom_call.1} parent=31 // pred_fallthru
          _
        %p163 = pneg %p35
        %p164 = pneg %p32
        %p165 = scmp.lt.s32.totalorder %s19, 1
        %s166 = scalar_select %p165, %s19, 1
        %s167 = smul.addr %s166, 8
        %s168 = scalar_lea.vmem %s1, %s167
        %p169 = pneg %p61
        %p170 = pneg %p58
        %p171 = pneg %p82
        %p172 = pneg %p79
        %p173 = pneg %p108
        %p174 = pneg %p105
        %s175 = sand.u32 %s95, 1
        %s176 = scalar_lea.sflag [#allocation5], %s175
        %s177 = sand.u32 %s95, 1
        %s178 = smul.addr %s177, 4
        %s179 = scalar_lea.vmem [#allocation6], %s178
        %p180 = scmp.lt.s32.totalorder %s19, 1
        %s181 = scalar_select %p180, %s19, 1
        %s182 = smul.addr %s181, 8
        %s183 = scalar_lea.vmem %s1, %s182
        %v184 = vld [vmem:[%s183] sm:$0xff]
        %v185 = vlaneseq
        %v186 = vand.u32 %v185, 127
        %187 = vset.pattern.permute.xlu0 0
        %188 = vperm.xlu0 %187, %v184
        %v189 = vpop.permute.xlu0 %188
        %vm190 = vcmp.eq.s32.totalorder %v186, %v189
        %191 = vset.pattern.permute.xlu0 1
        %192 = vperm.xlu0 %191, %v184
        %v193 = vpop.permute.xlu0 %192
        %vm194 = vcmp.eq.s32.totalorder %v186, %v193
        %vm195 = vmor %vm190, %vm194
        %196 = vset.pattern.permute.xlu0 2
        %197 = vperm.xlu0 %196, %v184
        %v198 = vpop.permute.xlu0 %197
        %vm199 = vcmp.eq.s32.totalorder %v186, %v198
        %vm200 = vmor %vm195, %vm199
        %201 = vset.pattern.permute.xlu0 3
        %202 = vperm.xlu0 %201, %v184
        %v203 = vpop.permute.xlu0 %202
        %vm204 = vcmp.eq.s32.totalorder %v186, %v203
        %vm205 = vmor %vm200, %vm204
        %v206 = vsel %vm205, 1, 0
        %v207 = vcvt.s32.f32 %v206
        %v208 = vpack.c.bf16 %v207, %v207
        %v209 = vld [vmem:[#allocation3] sm:$0xf]
        %v210 = vld [vmem:[#allocation3 + $0x4] sm:$0xf]
        %v211 = vld [vmem:[#allocation3 + $0x8] sm:$0xf]
        %v212 = vld [vmem:[#allocation3 + $0xc] sm:$0xf]
        %v213 = vld [vmem:[#allocation3 + $0x10] sm:$0xf]
        %v214 = vld [vmem:[#allocation3 + $0x14] sm:$0xf]
        %v215 = vld [vmem:[#allocation3 + $0x18] sm:$0xf]
        %v216 = vld [vmem:[#allocation3 + $0x1c] sm:$0xf]
        %v217 = vld [vmem:[#allocation3 + $0x20] sm:$0xf]
        %v218 = vld [vmem:[#allocation3 + $0x24] sm:$0xf]
        %v219 = vld [vmem:[#allocation3 + $0x28] sm:$0xf]
        %v220 = vld [vmem:[#allocation3 + $0x2c] sm:$0xf]
        %v221 = vld [vmem:[#allocation3 + $0x30] sm:$0xf]
        %v222 = vld [vmem:[#allocation3 + $0x34] sm:$0xf]
        %v223 = vld [vmem:[#allocation3 + $0x38] sm:$0xf]
        %v224 = vld [vmem:[#allocation3 + $0x3c] sm:$0xf]
        %v241 = vunpack.c.l.b16 %v209
        %v242 = vunpack.c.l.b16 %v210
        %v243 = vunpack.c.l.b16 %v211
        %v244 = vunpack.c.l.b16 %v212
        %v245 = vunpack.c.l.b16 %v213
        %v246 = vunpack.c.l.b16 %v214
        %v247 = vunpack.c.l.b16 %v215
        %v248 = vunpack.c.l.b16 %v216
        %v249 = vunpack.c.l.b16 %v217
        %v250 = vunpack.c.l.b16 %v218
        %v251 = vunpack.c.l.b16 %v219
        %v252 = vunpack.c.l.b16 %v220
        %v253 = vunpack.c.l.b16 %v221
        %v254 = vunpack.c.l.b16 %v222
        %v255 = vunpack.c.l.b16 %v223
        %v256 = vunpack.c.l.b16 %v224
        %v257 = vpack.c.b16 %v242, %v241
        %v258 = vpack.c.b16 %v244, %v243
        %v259 = vpack.c.b16 %v246, %v245
        %v260 = vpack.c.b16 %v248, %v247
        %v261 = vpack.c.b16 %v250, %v249
        %v262 = vpack.c.b16 %v252, %v251
        %v263 = vpack.c.b16 %v254, %v253
        %v264 = vpack.c.b16 %v256, %v255
        %273 = vmatpush.bf16.msra.mxu0 %v264
        %274 = vmatpush.bf16.msra.mxu0 %v263
        %275 = vmatpush.bf16.msra.mxu0 %v262
        %276 = vmatpush.bf16.msra.mxu0 %v261
        %277 = vmatpush.bf16.msra.mxu0 %v260
        %278 = vmatpush.bf16.msra.mxu0 %v259
        %279 = vmatpush.bf16.msra.mxu0 %v258
        %280 = vmatpush.bf16.msra.mxu0 %v257
        %281 = vmatmul.bf16.gmra.mxu0 %v208
        %v282 = vpop.f32.mrf.mxu0
        %v283 = vadd.f32 0.0, %v282
        %v284 = vpop.f32.mrf.mxu0
        %285 = vdwg.mxu0
        %v286 = vpack.c.bf16 %v283, %v283
        %287 = vst [vmem:[%s179] sm:$0xf] %v286
        %s288 = sand.u32 %s95, 1
        %s289 = scalar_lea.sflag [#allocation5], %s288
        %s290 = sand.u32 %s95, 1
        %s291 = smul.addr %s290, 4
        %s292 = scalar_lea.vmem [#allocation6], %s291
        // Predicated region
        $region37: #{tpu_custom_call.1} parent=31 // pred_check
          %p293 = pneg %p105
        $region38: #{tpu_custom_call.1} parent=31 // pred_check_branch
          %295 = sbr.rel (%p293) target = $region40
        $region39: #{tpu_custom_call.1} parent=31 // pred_region
          %297 = vsyncadd %s289, 0
          %s298 = smul.addr %s19, 4
          %s299 = scalar_lea.hbm %s3, %s298
          %s301 = sshll.u32 %s292, 4
          %s302 = int_to_ptr.vmem [resolvable:$true] %s301
          %s303 = sshll.u32 %s299, 4
          %s304 = int_to_ptr.hbm [resolvable:$true] %s303
          %306 = dma.vmem_to_hbm [thread:$0]  %s302, 64, %s304, %s289
        $region40: #{tpu_custom_call.1} parent=31 // pred_fallthru
          _
      $region32: #{tpu_custom_call.1} parent=5 // pred_fallthru
        _
      %p307 = scmp.le.s32.totalorder 2, %s14
      // Predicated region
      $region41: #{tpu_custom_call.1} parent=5 // pred_check
        %p308 = pneg %p307
      $region42: #{tpu_custom_call.1} parent=5 // pred_check_branch
        %310 = sbr.rel (%p308) target = $region44
      $region43: #{tpu_custom_call.1} parent=5 // pred_region
        %s311 = ssub.s32 %s14, 2
        // Predicated region
        $region45: #{tpu_custom_call.1} parent=43 // pred_check
          %p312 = pneg %p111
        $region46: #{tpu_custom_call.1} parent=43 // pred_check_branch
          %314 = sbr.rel (%p312) target = $region48
        $region47: #{tpu_custom_call.1} parent=43 // pred_region
          %s315 = sand.u32 %s96, 1
          %s316 = scalar_lea.sflag [#allocation5], %s315
          %s317 = sand.u32 %s96, 1
          %s318 = smul.addr %s317, 4
          %s319 = scalar_lea.vmem [#allocation6], %s318
          %321 = dma.done %s316, 64
        $region48: #{tpu_custom_call.1} parent=43 // pred_fallthru
          _
      $region44: #{tpu_custom_call.1} parent=5 // pred_fallthru
        _
    $region6: #{tpu_custom_call.1} parent=1 // loop_footer
      %s18 = sadd.s32 1, %s14
    $region7: #{tpu_custom_call.1} parent=1 // loop_footer_branch
      %13 = sbr.rel target = $region3
    $region8: #{tpu_custom_call.1} parent=1 // loop_exit
      _
    %322 = vsyncpa [#allocation4], 1
    %s323 = scalar_lea.sflag [#allocation4], 1
    %324 = vsyncpa %s323, 1
    %325 = vsyncpa [#allocation5], 1
    %s326 = scalar_lea.sflag [#allocation5], 1
    %327 = vsyncpa %s326, 1

</llo_original>
